<compile_context>
chip_gen: v7x
topology: tpu7x:2x2x1
jax: 0.10.0
libtpu: 0.0.40
codegen_flags: <defaults>
</compile_context>

<pallas_src>
import math

import jax
import jax.numpy as jnp
from jax.experimental import pallas as pl
from jax.experimental.pallas import tpu as pltpu


def _gaussian_rbf_kernel(x_ref, e_ref, const_ref, o_ref):
    # x_ref:     (TR, G)   packed distances (G distances per output row), f32
    # e_ref:     (G, W)    0/1 fan-out matrix, bf16 (E[j, j*n_rbf + k] = 1)
    # const_ref: (2, W)    row 0: offsets tiled G times, row 1: coeff tiled
    # o_ref:     (TR, W)   expanded basis, lane dense (W multiple of 128), f32
    x = x_ref[...]
    g = x.shape[-1]
    off = const_ref[0:1, :]        # (1, W)
    coeff = const_ref[1:2, :]      # (1, W)

    if g == 1:
        # n_rbf is already a multiple of 128: a plain lane broadcast is native.
        x_exp = x                  # (TR, 1) broadcasts against (1, W)
    else:
        # Fan each distance out across its n_rbf lanes on the MXU.  x is split
        # into three non-overlapping bf16 pieces (exact 24-bit reconstruction);
        # each bf16 piece times the 0/1 matrix is exact and accumulates in f32,
        # so x_exp reproduces x bit-exactly while the cross-lane interleave
        # uses the otherwise idle vector-extended (MXU) slots instead of
        # XLU relayouts / VMEM round-trips.
        e = e_ref[...]
        x_hi = x.astype(jnp.bfloat16)
        r1 = x - x_hi.astype(jnp.float32)
        x_mid = r1.astype(jnp.bfloat16)
        x_lo = (r1 - x_mid.astype(jnp.float32)).astype(jnp.bfloat16)
        x_exp = (jnp.dot(x_hi, e, preferred_element_type=jnp.float32)
                 + jnp.dot(x_mid, e, preferred_element_type=jnp.float32)
                 + jnp.dot(x_lo, e, preferred_element_type=jnp.float32))

    diff = x_exp - off
    # TODO(synk): optional bf16 output would halve HBM writes (kernel is
    # write-bound) but breaks the module's f32 contract, so it is not enabled.
    o_ref[...] = jnp.exp(coeff * (diff * diff))


def _rbf_reference_jnp(x, offsets, coeff):
    # Plain-jnp fallback used only for the tiny (< G element) ragged tail.
    return jnp.exp(coeff * (x[..., None] - offsets) ** 2)


def gaussian_rbf_pallas(inputs, offsets, widths, *, target_block_bytes=4 << 20):
    """Pallas equivalent of molpot GaussianRBF.forward.

    inputs : float32 array of any shape (pairwise distances)
    offsets: (n_rbf,) float32
    widths : (n_rbf,) float32
    returns: inputs.shape + (n_rbf,) float32
    """
    in_shape = inputs.shape
    n_rbf = int(offsets.shape[0])

    offsets = offsets.astype(jnp.float32)
    coeff = -0.5 / (widths.astype(jnp.float32) ** 2)

    x = inputs.reshape(-1).astype(jnp.float32)
    n = x.shape[0]
    if n == 0:
        return jnp.zeros((*in_shape, n_rbf), jnp.float32)

    # Pack G distances per output row so the row width W = G*n_rbf is a
    # multiple of 128 lanes (lane-dense, unmasked stores).
    g = 128 // math.gcd(n_rbf, 128)
    w = g * n_rbf

    # G-aligned bulk through Pallas; the (< G)-element tail through plain jnp.
    n_bulk = (n // g) * g
    rem = n - n_bulk

    pieces = []
    if n_bulk:
        rows = n_bulk // g
        x2d = x[:n_bulk].reshape(rows, g)

        # Resident constants: offsets / coeff tiled across the G packed slots,
        # merged into one (2, W) operand (single DMA stream), plus the 0/1
        # fan-out matrix E (G, W) in bf16 for the MXU expansion.
        off_row = jnp.tile(offsets.reshape(1, n_rbf), (1, g))
        coeff_row = jnp.tile(coeff.reshape(1, n_rbf), (1, g))
        consts = jnp.concatenate([off_row, coeff_row], axis=0)              # (2, W)
        e_mat = jnp.repeat(jnp.eye(g, dtype=jnp.bfloat16), n_rbf, axis=1)   # (G, W)

        # Row tile: ~target_block_bytes of output per grid step (amortizes the
        # ~0.35 us/step pipeline overhead; ~4 MiB reaches ~85-90% of the HBM
        # write roofline on v6e/v7x).  Multiple of 8 sublanes; capped at
        # ceil(rows/2) so the grid keeps >= 2 steps for v7x's dual TensorCores.
        # Double-buffered in+out blocks ~ 2.2x the output block, well under the
        # 32 MiB limit below (and under v5e's 16 MiB scoped default).
        bytes_per_row = w * 4
        tile_rows = max(8, (target_block_bytes // bytes_per_row) // 8 * 8)
        if rows > 8:
            half_rows = (((rows + 1) // 2) + 7) // 8 * 8
            tile_rows = min(tile_rows, max(8, half_rows))
        else:
            tile_rows = 8

        grid = (pl.cdiv(rows, tile_rows),)

        cost = pl.CostEstimate(
            flops=8 * n_bulk * n_rbf,
            transcendentals=n_bulk * n_rbf,
            bytes_accessed=4 * n_bulk * (n_rbf + 1),
        )

        out = pl.pallas_call(
            _gaussian_rbf_kernel,
            out_shape=jax.ShapeDtypeStruct((rows, w), jnp.float32),
            grid_spec=pltpu.PrefetchScalarGridSpec(
                num_scalar_prefetch=0,
                grid=grid,
                in_specs=[
                    pl.BlockSpec((tile_rows, g), lambda i: (i, 0)),
                    pl.BlockSpec((g, w), lambda i: (0, 0)),
                    pl.BlockSpec((2, w), lambda i: (0, 0)),
                ],
                out_specs=pl.BlockSpec((tile_rows, w), lambda i: (i, 0)),
            ),
            compiler_params=pltpu.CompilerParams(
                dimension_semantics=("parallel",),
                vmem_limit_bytes=32 * 1024 * 1024,
            ),
            cost_estimate=cost,
        )(x2d, e_mat, consts)

        # Free row-major reinterpretation of the packed layout -> (n_bulk, n_rbf).
        pieces.append(out.reshape(n_bulk, n_rbf))

    if rem:
        # Tiny tail (< G <= 128 distances): plain jnp, negligible cost.
        pieces.append(_rbf_reference_jnp(x[n_bulk:], offsets, coeff))

    y = pieces[0] if len(pieces) == 1 else jnp.concatenate(pieces, axis=0)
    return y.reshape(*in_shape, n_rbf)


def make_gaussian_rbf_params(n_rbf: int, cutoff: float, start: float = 0.0):
    """Deterministic parameter construction mirroring GaussianRBF.__init__."""
    offsets = jnp.linspace(start, cutoff, n_rbf, dtype=jnp.float32)
    width_val = jnp.abs(offsets[1] - offsets[0])
    widths = width_val * jnp.ones_like(offsets)
    return offsets, widths


if __name__ == "__main__":
    n_rbf = 16
    cutoff = 5.0
    offsets, widths = make_gaussian_rbf_params(n_rbf, cutoff)
    coeff = -0.5 / widths ** 2

    key = jax.random.PRNGKey(0)

    # Case 1: multi-dim input, N divisible by the packing factor (pure Pallas path).
    inputs = jax.random.uniform(key, (2, 64), dtype=jnp.float32) * cutoff
    y = jax.block_until_ready(gaussian_rbf_pallas(inputs, offsets, widths))
    y_ref = jnp.exp(coeff * (inputs[..., None] - offsets) ** 2)
    assert y.shape == (2, 64, n_rbf)
    assert jnp.allclose(y, y_ref, atol=1e-5, rtol=1e-5), float(jnp.max(jnp.abs(y - y_ref)))

    # Case 2: ragged N (exercises the Pallas bulk + jnp tail path).
    inputs2 = jax.random.uniform(jax.random.PRNGKey(1), (37,), dtype=jnp.float32) * cutoff
    y2 = jax.block_until_ready(gaussian_rbf_pallas(inputs2, offsets, widths))
    y2_ref = jnp.exp(coeff * (inputs2[..., None] - offsets) ** 2)
    assert y2.shape == (37, n_rbf)
    assert jnp.allclose(y2, y2_ref, atol=1e-5, rtol=1e-5), float(jnp.max(jnp.abs(y2 - y2_ref)))

    print("KERNEL_OK")
</pallas_src>

<mosaic_0001>
module attributes {stable_mosaic.version = 11 : i64} {
  func.func @_gaussian_rbf_kernel(%arg0: i32, %arg1: memref<8x8xf32, #tpu.memory_space<vmem>>, %arg2: memref<8x128xbf16, #tpu.memory_space<vmem>>, %arg3: memref<2x128xf32, #tpu.memory_space<vmem>>, %arg4: memref<8x128xf32, #tpu.memory_space<vmem>>) attributes {dimension_semantics = [#tpu.dimension_semantics<parallel>], iteration_bounds = array<i64: 2>, scalar_prefetch = 0 : i64, scratch_operands = 0 : i64, tpu.core_type = #tpu.core_type<tc>, window_params = [{transform_indices = @transform_0, window_bounds = array<i64: 8, 8>}, {pipeline_mode = #tpu.pipeline_mode<synchronous>, transform_indices = @transform_1, window_bounds = array<i64: 8, 128>}, {pipeline_mode = #tpu.pipeline_mode<synchronous>, transform_indices = @transform_2, window_bounds = array<i64: 2, 128>}, {transform_indices = @transform_3, window_bounds = array<i64: 8, 128>}]} {
    %c0 = arith.constant 0 : index
    %c0_0 = arith.constant 0 : index
    %0 = vector.load %arg1[%c0, %c0_0] : memref<8x8xf32, #tpu.memory_space<vmem>>, vector<8x8xf32>
    %c0_1 = arith.constant 0 : index
    %c0_2 = arith.constant 0 : index
    %1 = vector.load %arg3[%c0_1, %c0_2] : memref<2x128xf32, #tpu.memory_space<vmem>>, vector<1x128xf32>
    %c1 = arith.constant 1 : index
    %c0_3 = arith.constant 0 : index
    %2 = vector.load %arg3[%c1, %c0_3] : memref<2x128xf32, #tpu.memory_space<vmem>>, vector<1x128xf32>
    %c0_4 = arith.constant 0 : index
    %c0_5 = arith.constant 0 : index
    %3 = vector.load %arg2[%c0_4, %c0_5] : memref<8x128xbf16, #tpu.memory_space<vmem>>, vector<8x128xbf16>
    %4 = arith.truncf %0 : vector<8x8xf32> to vector<8x8xbf16>
    %5 = arith.extf %4 : vector<8x8xbf16> to vector<8x8xf32>
    %6 = arith.subf %0, %5 : vector<8x8xf32>
    %7 = arith.truncf %6 : vector<8x8xf32> to vector<8x8xbf16>
    %8 = arith.extf %7 : vector<8x8xbf16> to vector<8x8xf32>
    %9 = arith.subf %6, %8 : vector<8x8xf32>
    %10 = arith.truncf %9 : vector<8x8xf32> to vector<8x8xbf16>
    %cst = arith.constant dense<0.000000e+00> : vector<8x128xf32>
    %11 = tpu.matmul %4, %3, %cst {dimension_numbers = #tpu.dot_dimension_numbers<[1], [0], [0], [1], [0, 0, 1, 1], [], []>} : vector<8x8xbf16>, vector<8x128xbf16>, vector<8x128xf32> -> vector<8x128xf32>
    %cst_6 = arith.constant dense<0.000000e+00> : vector<8x128xf32>
    %12 = tpu.matmul %7, %3, %cst_6 {dimension_numbers = #tpu.dot_dimension_numbers<[1], [0], [0], [1], [0, 0, 1, 1], [], []>} : vector<8x8xbf16>, vector<8x128xbf16>, vector<8x128xf32> -> vector<8x128xf32>
    %13 = arith.addf %11, %12 : vector<8x128xf32>
    %cst_7 = arith.constant dense<0.000000e+00> : vector<8x128xf32>
    %14 = tpu.matmul %10, %3, %cst_7 {dimension_numbers = #tpu.dot_dimension_numbers<[1], [0], [0], [1], [0, 0, 1, 1], [], []>} : vector<8x8xbf16>, vector<8x128xbf16>, vector<8x128xf32> -> vector<8x128xf32>
    %15 = arith.addf %13, %14 : vector<8x128xf32>
    %16 = vector.broadcast %1 : vector<1x128xf32> to vector<8x128xf32>
    %17 = arith.subf %15, %16 : vector<8x128xf32>
    %18 = arith.mulf %17, %17 : vector<8x128xf32>
    %19 = vector.broadcast %2 : vector<1x128xf32> to vector<8x128xf32>
    %20 = arith.mulf %19, %18 : vector<8x128xf32>
    %21 = math.exp %20 : vector<8x128xf32>
    %c0_8 = arith.constant 0 : index
    %c0_9 = arith.constant 0 : index
    %22 = vector.load %arg4[%c0_8, %c0_9] : memref<8x128xf32, #tpu.memory_space<vmem>>, vector<8x128xf32>
    tpu.vector_store %arg4[%c0_8, %c0_9], %21 {strides = array<i32>} : memref<8x128xf32, #tpu.memory_space<vmem>>, vector<8x128xf32>,
    return
  }
  func.func @transform_0(%arg0: i32) -> (i32, i32) {
    %c0_i32 = arith.constant 0 : i32
    %c0_i32_0 = arith.constant 0 : i32
    return %arg0, %c0_i32 : i32, i32
  }
  func.func @transform_1(%arg0: i32) -> (i32, i32) {
    %c0_i32 = arith.constant 0 : i32
    %c0_i32_0 = arith.constant 0 : i32
    %c0_i32_1 = arith.constant 0 : i32
    return %c0_i32, %c0_i32_0 : i32, i32
  }
  func.func @transform_2(%arg0: i32) -> (i32, i32) {
    %c0_i32 = arith.constant 0 : i32
    %c0_i32_0 = arith.constant 0 : i32
    %c0_i32_1 = arith.constant 0 : i32
    return %c0_i32, %c0_i32_0 : i32, i32
  }
  func.func @transform_3(%arg0: i32) -> (i32, i32) {
    %c0_i32 = arith.constant 0 : i32
    %c0_i32_0 = arith.constant 0 : i32
    return %arg0, %c0_i32 : i32, i32
  }
}

</mosaic_0001>

<llo_original>
// kernel: tpu_custom_call.1
$region0: #{tpu_custom_call.1}
  #allocation0 [shape = 'u32[]', space=smem, size = 0x4, offset = 0x4, fixed_abs, tag = 'smem constant byte address 0x4 - core index']
  #allocation1 [shape = 'u32[144,128]{1,0:T(1,128)}', space=vmem, size = 0x12000, scoped, tag = 'internal scratch']
  %s0 = inlined_call_operand.vmem [shape: f32[16,8], index: 0, kind: input, shape index: {}]
  %s1 = inlined_call_operand.vmem [shape: bf16[8,128], index: 1, kind: input, shape index: {}]
  %s2 = inlined_call_operand.vmem [shape: f32[2,128], index: 2, kind: input, shape index: {}]
  %s3 = inlined_call_operand.hbm [shape: f32[16,128], index: 3, kind: output, shape index: {}]
  %s4 = sld [smem:[#allocation0]]
  $region45: #{tpu_custom_call.1} parent=0
    _
  %s6 = ssub.s32 1, %s4
  %s7 = scalar_select 0, %s6, %s4
  $region1: #{tpu_custom_call.1} parent=0
    #allocation2 [shape = 'u8[8192]{0}', space=vmem, size = 0x2000, scoped, tag = 'output window, operand 0']
    #allocation3 [shape = 's32[2]{0}', space=sflag, size = 0x8, scoped, tag = 'scoped memory for tpu_custom_call.1']
    %8 = vsyncpa [#allocation3], 0
    %s9 = scalar_lea.sflag [#allocation3], 1
    %10 = vsyncpa %s9, 0
    loop: start=0, step=1, limit=4
    $region2: #{tpu_custom_call.1} parent=1 // loop_pre_header
      _
    $region3: #{tpu_custom_call.1} parent=1 // loop_header
      %s12 = sphi 0, %s16
      %p13 = scmp.ge.s32.totalorder %s12, 4
      %s22 = sphi 0, %s24
      %s25 = sphi 0, %s22
      %s26 = sphi 0, %s25
      %s42 = sphi 0, %s26
      %s46 = sphi 0, %s46
      %s48 = sphi 0, %s46
      %s49 = sphi 0, %s48
      %s63 = sphi 0, %s49
      %s67 = sphi 0, %s67
      %s69 = sphi 0, %s67
      %s70 = sphi 0, %s69
      %s84 = sphi 0, %s70
      %s90 = sphi 0, %s92
      %s93 = sphi 0, %s90
      %s94 = sphi 0, %s93
      %s110 = sphi 0, %s94
    $region4: #{tpu_custom_call.1} parent=1 // loop_header_branch
      %15 = sbr.rel (%p13) target = $region8
    $region5: #{tpu_custom_call.1} parent=1 // loop_body
      %s17 = ssub.s32 %s12, 1
      %s18 = ssub.s32 %s12, 2
      %s19 = sadd.s32 %s12, 1
      %s20 = ssub.s32 %s12, %s19
      %p21 = scmp.eq.s32.totalorder %s20, 0
      %s23 = sadd.s32 %s22, 1
      %s24 = scalar_select %p21, %s22, %s23
      %p27 = pneg %p21
      %p28 = scmp.eq.s32.totalorder %s12, 1
      %p29 = por %p27, %p28
      %p30 = scmp.ne.s32.totalorder %s22, %s25
      %p31 = scmp.eq.s32.totalorder %s12, 0
      %p32 = por %p30, %p31
      %p33 = scmp.ne.s32.totalorder %s22, %s25
      %p34 = scmp.eq.s32.totalorder %s17, 1
      %p35 = por %p33, %p34
      %p36 = scmp.ne.s32.totalorder %s25, %s26
      %p37 = scmp.eq.s32.totalorder %s17, 0
      %p38 = por %p36, %p37
      %p39 = scmp.ne.s32.totalorder %s25, %s26
      %p40 = scmp.eq.s32.totalorder %s18, 1
      %p41 = por %p39, %p40
      %p43 = scmp.ne.s32.totalorder %s26, %s42
      %p44 = scmp.eq.s32.totalorder %s18, 0
      %p45 = por %p43, %p44
      %s47 = sadd.s32 %s46, 1
      %p50 = scmp.eq.s32.totalorder %s12, 1
      %p51 = scmp.ne.s32.totalorder %s46, %s48
      %p52 = scmp.eq.s32.totalorder %s12, 0
      %p53 = por %p51, %p52
      %p54 = scmp.ne.s32.totalorder %s46, %s48
      %p55 = scmp.eq.s32.totalorder %s17, 1
      %p56 = por %p54, %p55
      %p57 = scmp.ne.s32.totalorder %s48, %s49
      %p58 = scmp.eq.s32.totalorder %s17, 0
      %p59 = por %p57, %p58
      %p60 = scmp.ne.s32.totalorder %s48, %s49
      %p61 = scmp.eq.s32.totalorder %s18, 1
      %p62 = por %p60, %p61
      %p64 = scmp.ne.s32.totalorder %s49, %s63
      %p65 = scmp.eq.s32.totalorder %s18, 0
      %p66 = por %p64, %p65
      %s68 = sadd.s32 %s67, 1
      %p71 = scmp.eq.s32.totalorder %s12, 1
      %p72 = scmp.ne.s32.totalorder %s67, %s69
      %p73 = scmp.eq.s32.totalorder %s12, 0
      %p74 = por %p72, %p73
      %p75 = scmp.ne.s32.totalorder %s67, %s69
      %p76 = scmp.eq.s32.totalorder %s17, 1
      %p77 = por %p75, %p76
      %p78 = scmp.ne.s32.totalorder %s69, %s70
      %p79 = scmp.eq.s32.totalorder %s17, 0
      %p80 = por %p78, %p79
      %p81 = scmp.ne.s32.totalorder %s69, %s70
      %p82 = scmp.eq.s32.totalorder %s18, 1
      %p83 = por %p81, %p82
      %p85 = scmp.ne.s32.totalorder %s70, %s84
      %p86 = scmp.eq.s32.totalorder %s18, 0
      %p87 = por %p85, %p86
      %s88 = ssub.s32 %s12, %s19
      %p89 = scmp.eq.s32.totalorder %s88, 0
      %s91 = sadd.s32 %s90, 1
      %s92 = scalar_select %p89, %s90, %s91
      %p95 = pneg %p89
      %p96 = scmp.eq.s32.totalorder %s12, 1
      %p97 = por %p95, %p96
      %p98 = scmp.ne.s32.totalorder %s90, %s93
      %p99 = scmp.eq.s32.totalorder %s12, 0
      %p100 = por %p98, %p99
      %p101 = scmp.ne.s32.totalorder %s90, %s93
      %p102 = scmp.eq.s32.totalorder %s17, 1
      %p103 = por %p101, %p102
      %p104 = scmp.ne.s32.totalorder %s93, %s94
      %p105 = scmp.eq.s32.totalorder %s17, 0
      %p106 = por %p104, %p105
      %p107 = scmp.ne.s32.totalorder %s93, %s94
      %p108 = scmp.eq.s32.totalorder %s18, 1
      %p109 = por %p107, %p108
      %p111 = scmp.ne.s32.totalorder %s94, %s110
      %p112 = scmp.eq.s32.totalorder %s18, 0
      %p113 = por %p111, %p112
      %p114 = scmp.le.s32.totalorder 1, %s12
      %p115 = scmp.lt.s32.totalorder %s12, 3
      %p116 = pnand %p114, %p115
      %p117 = pneg %p116
      // Predicated region
      $region9: #{tpu_custom_call.1} parent=5 // pred_check
        _
      $region10: #{tpu_custom_call.1} parent=5 // pred_check_branch
        %119 = sbr.rel (%p116) target = $region12
      $region11: #{tpu_custom_call.1} parent=5 // pred_region
        %s120 = ssub.s32 %s12, 1
        // Predicated region
        $region13: #{tpu_custom_call.1} parent=11 // pred_check
          %p121 = pneg %p59
        $region14: #{tpu_custom_call.1} parent=11 // pred_check_branch
          %123 = sbr.rel (%p121) target = $region16
        $region15: #{tpu_custom_call.1} parent=11 // pred_region
          _
        $region16: #{tpu_custom_call.1} parent=11 // pred_fallthru
          _
        // Predicated region
        $region17: #{tpu_custom_call.1} parent=11 // pred_check
          %p124 = pneg %p80
        $region18: #{tpu_custom_call.1} parent=11 // pred_check_branch
          %126 = sbr.rel (%p124) target = $region20
        $region19: #{tpu_custom_call.1} parent=11 // pred_region
          _
        $region20: #{tpu_custom_call.1} parent=11 // pred_fallthru
          _
      $region12: #{tpu_custom_call.1} parent=5 // pred_fallthru
        _
      %p127 = scmp.lt.s32.totalorder %s12, 2
      // Predicated region
      $region21: #{tpu_custom_call.1} parent=5 // pred_check
        %p128 = pneg %p127
      $region22: #{tpu_custom_call.1} parent=5 // pred_check_branch
        %130 = sbr.rel (%p128) target = $region24
      $region23: #{tpu_custom_call.1} parent=5 // pred_region
        // Predicated region
        $region25: #{tpu_custom_call.1} parent=23 // pred_check
          %p131 = pneg %p32
        $region26: #{tpu_custom_call.1} parent=23 // pred_check_branch
          %133 = sbr.rel (%p131) target = $region28
        $region27: #{tpu_custom_call.1} parent=23 // pred_region
          %p134 = scmp.lt.s32.totalorder %s12, 1
          %s135 = scalar_select %p134, %s12, 1
          %s136 = smul.addr %s135, 8
          %s137 = scalar_lea.vmem %s0, %s136
        $region28: #{tpu_custom_call.1} parent=23 // pred_fallthru
          _
      $region24: #{tpu_custom_call.1} parent=5 // pred_fallthru
        _
      %p138 = scmp.le.s32.totalorder 1, %s12
      %p139 = scmp.lt.s32.totalorder %s12, 3
      %p140 = pnand %p138, %p139
      %p141 = pneg %p140
      // Predicated region
      $region29: #{tpu_custom_call.1} parent=5 // pred_check
        _
      $region30: #{tpu_custom_call.1} parent=5 // pred_check_branch
        %143 = sbr.rel (%p140) target = $region32
      $region31: #{tpu_custom_call.1} parent=5 // pred_region
        %s144 = ssub.s32 %s12, 1
        %p145 = scmp.lt.s32.totalorder %s17, 1
        %s146 = scalar_select %p145, %s17, 1
        %s147 = smul.addr %s146, 8
        %s148 = scalar_lea.vmem %s0, %s147
        %p149 = pneg %p38
        %p150 = pneg %p35
        %p151 = pneg %p59
        %p152 = pneg %p56
        %p153 = pneg %p80
        %p154 = pneg %p77
        %p155 = pneg %p106
        %p156 = pneg %p103
        %s157 = sand.u32 %s93, 1
        %s158 = scalar_lea.sflag [#allocation3], %s157
        %s159 = sand.u32 %s93, 1
        %s160 = smul.addr %s159, 8
        %s161 = scalar_lea.vmem [#allocation2], %s160
        %p162 = scmp.lt.s32.totalorder %s17, 1
        %s163 = scalar_select %p162, %s17, 1
        %s164 = smul.addr %s163, 8
        %s165 = scalar_lea.vmem %s0, %s164
        %v167 = vld [vmem:[%s165] sm:$0xff]
        %v168 = vld [vmem:[%s2] sm:$0x1]
        %v169 = vld [vmem:[%s2 + $0x1] sm:$0x1]
        %v170 = vld [vmem:[%s1] sm:$0xf]
        %v171 = vpack.c.bf16 %v167, %v167
        %v172 = vunpack.c.l.bf16 %v171
        %v173 = vsub.f32 %v167, %v172
        %v174 = vpack.c.bf16 %v173, %v173
        %v175 = vunpack.c.l.bf16 %v174
        %v176 = vsub.f32 %v173, %v175
        %v177 = vpack.c.bf16 %v176, %v176
        %vm178 = vcmask 64512
        %v180 = vsel %vm178, %v174, 0
        %vm182 = vcmask 1043456
        %v184 = vsel %vm182, %v170, 0
        %186 = vmatprep.subr.bf16.mxu0 0
        %187 = vmatpush1.bf16.msra.mxu0 %v184
        %188 = vmatprep.subr.bf16.mxu0 0
        %189 = vmatpush1.bf16.msra.mxu0 0
        %190 = vmatprep.subr.bf16.mxu0 0
        %191 = vmatpush1.bf16.msra.mxu0 0
        %192 = vmatprep.subr.bf16.mxu0 0
        %193 = vmatpush1.bf16.msra.mxu0 0
        %194 = vmatprep.subr.bf16.mxu0 0
        %195 = vmatpush1.bf16.msra.mxu0 0
        %196 = vmatprep.subr.bf16.mxu0 0
        %197 = vmatpush1.bf16.msra.mxu0 0
        %198 = vmatprep.subr.bf16.mxu0 0
        %199 = vmatpush1.bf16.msra.mxu0 0
        %200 = vmatprep.subr.bf16.mxu0 0
        %201 = vmatpush1.bf16.msra.mxu0 0
        %202 = vmatprep.subr.bf16.mxu0 0
        %203 = vmatpush1.bf16.msra.mxu0 0
        %204 = vmatprep.subr.bf16.mxu0 0
        %205 = vmatpush1.bf16.msra.mxu0 0
        %206 = vmatprep.subr.bf16.mxu0 0
        %207 = vmatpush1.bf16.msra.mxu0 0
        %208 = vmatprep.subr.bf16.mxu0 0
        %209 = vmatpush1.bf16.msra.mxu0 0
        %210 = vmatprep.subr.bf16.mxu0 0
        %211 = vmatpush1.bf16.msra.mxu0 0
        %212 = vmatprep.subr.bf16.mxu0 0
        %213 = vmatpush1.bf16.msra.mxu0 0
        %214 = vmatprep.subr.bf16.mxu0 0
        %215 = vmatpush1.bf16.msra.mxu0 0
        %216 = vmatprep.subr.bf16.mxu0 0
        %217 = vmatpush1.bf16.msra.mxu0 0
        %218 = vmatprep.mubr.bf16.mxu0 0
        %219 = vmatmul.mubr.bf16.gmra.mrb[0].mxu0 %v180
        %v220 = vpop.f32.mrb[0].mxu0
        %v221 = vadd.f32 0.0, %v220
        %v222 = vpop.f32.mrb[0].mxu0
        %v223 = vpop.f32.mrb[0].mxu0
        %v224 = vpop.f32.mrb[0].mxu0
        %225 = vdwg.mxu0
        %v227 = vsel %vm178, %v171, 0
        %229 = vmatprep.subr.bf16.mxu0 0
        %230 = vmatpush1.bf16.msra.mxu0 %v184
        %231 = vmatprep.subr.bf16.mxu0 0
        %232 = vmatpush1.bf16.msra.mxu0 0
        %233 = vmatprep.subr.bf16.mxu0 0
        %234 = vmatpush1.bf16.msra.mxu0 0
        %235 = vmatprep.subr.bf16.mxu0 0
        %236 = vmatpush1.bf16.msra.mxu0 0
        %237 = vmatprep.subr.bf16.mxu0 0
        %238 = vmatpush1.bf16.msra.mxu0 0
        %239 = vmatprep.subr.bf16.mxu0 0
        %240 = vmatpush1.bf16.msra.mxu0 0
        %241 = vmatprep.subr.bf16.mxu0 0
        %242 = vmatpush1.bf16.msra.mxu0 0
        %243 = vmatprep.subr.bf16.mxu0 0
        %244 = vmatpush1.bf16.msra.mxu0 0
        %245 = vmatprep.subr.bf16.mxu0 0
        %246 = vmatpush1.bf16.msra.mxu0 0
        %247 = vmatprep.subr.bf16.mxu0 0
        %248 = vmatpush1.bf16.msra.mxu0 0
        %249 = vmatprep.subr.bf16.mxu0 0
        %250 = vmatpush1.bf16.msra.mxu0 0
        %251 = vmatprep.subr.bf16.mxu0 0
        %252 = vmatpush1.bf16.msra.mxu0 0
        %253 = vmatprep.subr.bf16.mxu0 0
        %254 = vmatpush1.bf16.msra.mxu0 0
        %255 = vmatprep.subr.bf16.mxu0 0
        %256 = vmatpush1.bf16.msra.mxu0 0
        %257 = vmatprep.subr.bf16.mxu0 0
        %258 = vmatpush1.bf16.msra.mxu0 0
        %259 = vmatprep.subr.bf16.mxu0 0
        %260 = vmatpush1.bf16.msra.mxu0 0
        %261 = vmatprep.mubr.bf16.mxu0 0
        %262 = vmatmul.mubr.bf16.gmra.mrb[0].mxu0 %v227
        %v263 = vpop.f32.mrb[0].mxu0
        %v264 = vadd.f32 %v221, %v263
        %v265 = vpop.f32.mrb[0].mxu0
        %v266 = vpop.f32.mrb[0].mxu0
        %v267 = vpop.f32.mrb[0].mxu0
        %268 = vdwg.mxu0
        %v270 = vsel %vm178, %v177, 0
        %272 = vmatprep.subr.bf16.mxu0 0
        %273 = vmatpush1.bf16.msra.mxu0 %v184
        %274 = vmatprep.subr.bf16.mxu0 0
        %275 = vmatpush1.bf16.msra.mxu0 0
        %276 = vmatprep.subr.bf16.mxu0 0
        %277 = vmatpush1.bf16.msra.mxu0 0
        %278 = vmatprep.subr.bf16.mxu0 0
        %279 = vmatpush1.bf16.msra.mxu0 0
        %280 = vmatprep.subr.bf16.mxu0 0
        %281 = vmatpush1.bf16.msra.mxu0 0
        %282 = vmatprep.subr.bf16.mxu0 0
        %283 = vmatpush1.bf16.msra.mxu0 0
        %284 = vmatprep.subr.bf16.mxu0 0
        %285 = vmatpush1.bf16.msra.mxu0 0
        %286 = vmatprep.subr.bf16.mxu0 0
        %287 = vmatpush1.bf16.msra.mxu0 0
        %288 = vmatprep.subr.bf16.mxu0 0
        %289 = vmatpush1.bf16.msra.mxu0 0
        %290 = vmatprep.subr.bf16.mxu0 0
        %291 = vmatpush1.bf16.msra.mxu0 0
        %292 = vmatprep.subr.bf16.mxu0 0
        %293 = vmatpush1.bf16.msra.mxu0 0
        %294 = vmatprep.subr.bf16.mxu0 0
        %295 = vmatpush1.bf16.msra.mxu0 0
        %296 = vmatprep.subr.bf16.mxu0 0
        %297 = vmatpush1.bf16.msra.mxu0 0
        %298 = vmatprep.subr.bf16.mxu0 0
        %299 = vmatpush1.bf16.msra.mxu0 0
        %300 = vmatprep.subr.bf16.mxu0 0
        %301 = vmatpush1.bf16.msra.mxu0 0
        %302 = vmatprep.subr.bf16.mxu0 0
        %303 = vmatpush1.bf16.msra.mxu0 0
        %304 = vmatprep.mubr.bf16.mxu0 0
        %305 = vmatmul.mubr.bf16.gmra.mrb[0].mxu0 %v270
        %v306 = vpop.f32.mrb[0].mxu0
        %v307 = vadd.f32 0.0, %v306
        %v308 = vpop.f32.mrb[0].mxu0
        %v309 = vpop.f32.mrb[0].mxu0
        %v310 = vpop.f32.mrb[0].mxu0
        %311 = vdwg.mxu0
        %v312 = vadd.f32 %v264, %v307
        %v313 = vlaneseq
        %v314 = vshrl.u32 %v313, 7
        %v315 = vsub.s32 0, %v314
        %v316 = vrot.slane %v168, %v315
        %v317 = vsub.f32 %v312, %v316
        %v318 = vmul.f32 %v317, %v317
        %v319 = vlaneseq
        %v320 = vshrl.u32 %v319, 7
        %v321 = vsub.s32 0, %v320
        %v322 = vrot.slane %v169, %v321
        %v323 = vmul.f32 %v322, %v318
        %v324 = vmul.f32 %v323, 1.442695
        %v325 = vpow.pop %v324
        %326 = vst [vmem:[%s161] sm:$0xff] %v325
        %s327 = sand.u32 %s93, 1
        %s328 = scalar_lea.sflag [#allocation3], %s327
        %s329 = sand.u32 %s93, 1
        %s330 = smul.addr %s329, 8
        %s331 = scalar_lea.vmem [#allocation2], %s330
        // Predicated region
        $region33: #{tpu_custom_call.1} parent=31 // pred_check
          %p332 = pneg %p103
        $region34: #{tpu_custom_call.1} parent=31 // pred_check_branch
          %334 = sbr.rel (%p332) target = $region36
        $region35: #{tpu_custom_call.1} parent=31 // pred_region
          %s336 = ssub.s32 128, 128
          %337 = vsyncadd %s328, %s336
          %s338 = smul.addr %s17, 128
          %s339 = scalar_lea.hbm %s3, %s338
          %s341 = sshll.u32 %s331, 4
          %s342 = int_to_ptr.vmem [resolvable:$true] %s341
          %344 = dma.vmem_to_hbm [thread:$0]  %s342, 128, %s339, %s328
        $region36: #{tpu_custom_call.1} parent=31 // pred_fallthru
          _
      $region32: #{tpu_custom_call.1} parent=5 // pred_fallthru
        _
      %p345 = scmp.le.s32.totalorder 2, %s12
      // Predicated region
      $region37: #{tpu_custom_call.1} parent=5 // pred_check
        %p346 = pneg %p345
      $region38: #{tpu_custom_call.1} parent=5 // pred_check_branch
        %348 = sbr.rel (%p346) target = $region40
      $region39: #{tpu_custom_call.1} parent=5 // pred_region
        %s349 = ssub.s32 %s12, 2
        // Predicated region
        $region41: #{tpu_custom_call.1} parent=39 // pred_check
          %p350 = pneg %p109
        $region42: #{tpu_custom_call.1} parent=39 // pred_check_branch
          %352 = sbr.rel (%p350) target = $region44
        $region43: #{tpu_custom_call.1} parent=39 // pred_region
          %s353 = sand.u32 %s94, 1
          %s354 = scalar_lea.sflag [#allocation3], %s353
          %s355 = sand.u32 %s94, 1
          %s356 = smul.addr %s355, 8
          %s357 = scalar_lea.vmem [#allocation2], %s356
          %358 = dma.done %s354, 128
        $region44: #{tpu_custom_call.1} parent=39 // pred_fallthru
          _
      $region40: #{tpu_custom_call.1} parent=5 // pred_fallthru
        _
    $region6: #{tpu_custom_call.1} parent=1 // loop_footer
      %s16 = sadd.s32 1, %s12
    $region7: #{tpu_custom_call.1} parent=1 // loop_footer_branch
      %11 = sbr.rel target = $region3
    $region8: #{tpu_custom_call.1} parent=1 // loop_exit
      _
    %359 = vsyncpa [#allocation3], 1
    %s360 = scalar_lea.sflag [#allocation3], 1
    %361 = vsyncpa %s360, 1

</llo_original>
